<compile_context>
chip_gen: v6e
topology: v6e:2x2x1
jax: 0.10.0
libtpu: 0.0.40
codegen_flags: <defaults>
</compile_context>

<pallas_src>
import jax
import jax.numpy as jnp
from jax import lax
from jax.experimental import pallas as pl
from jax.experimental.pallas import tpu as pltpu

NUM_CLASSES = 20
FEAT_DIM = 64


def _center_loss_kernel(x_ref, lab_ref, cen_ref, out_ref, xa_ref, ca_ref):
    """Single invocation over the whole problem.

    x_ref:   (N*B, D)   f32   all views' embeddings, flattened over the view axis
    lab_ref: (N*B, 1)   i32   matching labels
    cen_ref: (C, D)     f32   class centers
    out_ref: (1, 1)     f32   scalar loss (SMEM)
    xa_ref:  (N*B, D+2) f32   VMEM scratch: augmented lhs
    ca_ref:  (C, D+2)   f32   VMEM scratch: augmented rhs
    """
    x = x_ref[...]                    # (NB, D)
    lab = lab_ref[...]                # (NB, 1) int32
    centers = cen_ref[...]            # (C, D)
    NB, D = x.shape
    C = centers.shape[0]

    # Assemble augmented operands so ONE MXU pass yields the full squared
    # distance matrix:  sq[b,j] = x.(-2c) + 1*||c_j||^2 + ||x_b||^2*1
    xa_ref[:, :D] = x
    xa_ref[:, D:D + 1] = jnp.ones((NB, 1), jnp.float32)
    xa_ref[:, D + 1:D + 2] = jnp.sum(x * x, axis=1, keepdims=True)

    ca_ref[:, :D] = -2.0 * centers
    ca_ref[:, D:D + 1] = jnp.sum(centers * centers, axis=1, keepdims=True)
    ca_ref[:, D + 1:D + 2] = jnp.ones((C, 1), jnp.float32)

    sq = lax.dot_general(xa_ref[...], ca_ref[...],
                         (((1,), (1,)), ((), ())),
                         preferred_element_type=jnp.float32)   # (NB, C)

    # max(., 0) guards the sqrt against tiny negative values from fp
    # cancellation (intentional, documented divergence from the literal
    # PyTorch path, which would produce NaN in that degenerate case).
    distmat = jnp.sqrt(jnp.maximum(sq, 0.0))

    # mask[b, j] = (labels[b] == j)
    classes = lax.broadcasted_iota(jnp.int32, (NB, C), 1)
    mask = (lab == classes).astype(jnp.float32)

    # clip AFTER masking (matches PyTorch: masked-out entries contribute 1e-12).
    dist = jnp.clip(distmat * mask, 1e-12, 1e12)

    # mean over (B, C) per view, then mean over N views == global mean over
    # (N*B, C) since every view has the same batch size.  Scalar goes to SMEM.
    out_ref[0, 0] = jnp.sum(dist) / (NB * C)


def center_loss(embeddings, labels, centers):
    """embeddings: (N, B, D) f32, labels: (N, B) int, centers: (C, D) f32 -> scalar f32."""
    N, B, D = embeddings.shape
    C, Dc = centers.shape
    assert D == Dc

    x = embeddings.astype(jnp.float32).reshape(N * B, D)
    lab = labels.astype(jnp.int32).reshape(N * B, 1)
    cen = centers.astype(jnp.float32)

    out = pl.pallas_call(
        _center_loss_kernel,
        out_shape=jax.ShapeDtypeStruct((1, 1), jnp.float32),
        # No grid: one invocation, full arrays as single VMEM blocks.
        in_specs=[
            pl.BlockSpec((N * B, D), lambda: (0, 0)),
            pl.BlockSpec((N * B, 1), lambda: (0, 0)),
            pl.BlockSpec((C, D), lambda: (0, 0)),
        ],
        # Scalar result through SMEM: avoids a lane-masked vst into a padded
        # (8,128) VMEM tile for a single value.
        out_specs=pl.BlockSpec(memory_space=pltpu.SMEM),
        scratch_shapes=[
            pltpu.VMEM((N * B, D + 2), jnp.float32),
            pltpu.VMEM((C, D + 2), jnp.float32),
        ],
    )(x, lab, cen)
    return out[0, 0]


def _center_loss_ref(embeddings, labels, centers):
    """Pure-JAX reference mirroring the PyTorch forward exactly (per-view loop)."""
    N = embeddings.shape[0]
    total = 0.0
    for i in range(N):
        x = embeddings[i]
        lab = labels[i]
        C = centers.shape[0]
        distmat = (jnp.sum(x ** 2, axis=1, keepdims=True)
                   + jnp.sum(centers ** 2, axis=1)[None, :]
                   - 2.0 * x @ centers.T)
        distmat = jnp.sqrt(distmat)
        mask = (lab[:, None] == jnp.arange(C)[None, :]).astype(jnp.float32)
        dist = jnp.clip(distmat * mask, 1e-12, 1e12)
        total = total + jnp.mean(dist)
    return total / N


if __name__ == "__main__":
    key = jax.random.PRNGKey(0)
    k_cen, k_emb, k_lab = jax.random.split(key, 3)

    N_VIEWS, BATCH = 2, 8
    # Deterministic "parameter" init, matching torch.randn(num_classes, feat_dim)
    centers = jax.random.normal(k_cen, (NUM_CLASSES, FEAT_DIM), dtype=jnp.float32)
    embeddings = jax.random.normal(k_emb, (N_VIEWS, BATCH, FEAT_DIM), dtype=jnp.float32)
    labels = jax.random.randint(k_lab, (N_VIEWS, BATCH), 0, NUM_CLASSES, dtype=jnp.int32)

    loss = center_loss(embeddings, labels, centers)
    loss = jax.block_until_ready(loss)

    ref = _center_loss_ref(embeddings, labels, centers)
    assert jnp.allclose(loss, ref, rtol=1e-5, atol=1e-5), (loss, ref)

    print("KERNEL_OK")
</pallas_src>

<mosaic_0001>
module attributes {stable_mosaic.version = 11 : i64} {
  func.func @_center_loss_kernel(%arg0: memref<16x64xf32, #tpu.memory_space<vmem>>, %arg1: memref<16x1xi32, #tpu.memory_space<vmem>>, %arg2: memref<20x64xf32, #tpu.memory_space<vmem>>, %arg3: memref<1x1xf32, #tpu.memory_space<smem>>, %arg4: memref<16x66xf32, #tpu.memory_space<vmem>>, %arg5: memref<20x66xf32, #tpu.memory_space<vmem>>) attributes {dimension_semantics = [], scalar_prefetch = 0 : i64, scratch_operands = 2 : i64, tpu.core_type = #tpu.core_type<tc>} {
    %c0 = arith.constant 0 : index
    %c0_0 = arith.constant 0 : index
    %0 = vector.load %arg0[%c0, %c0_0] : memref<16x64xf32, #tpu.memory_space<vmem>>, vector<16x64xf32>
    %c0_1 = arith.constant 0 : index
    %c0_2 = arith.constant 0 : index
    %1 = vector.load %arg1[%c0_1, %c0_2] : memref<16x1xi32, #tpu.memory_space<vmem>>, vector<16x1xi32>
    %c0_3 = arith.constant 0 : index
    %c0_4 = arith.constant 0 : index
    %2 = vector.load %arg2[%c0_3, %c0_4] : memref<20x64xf32, #tpu.memory_space<vmem>>, vector<20x64xf32>
    %c0_5 = arith.constant 0 : index
    %c0_6 = arith.constant 0 : index
    %3 = vector.load %arg4[%c0_5, %c0_6] : memref<16x66xf32, #tpu.memory_space<vmem>>, vector<16x64xf32>
    tpu.vector_store %arg4[%c0_5, %c0_6], %0 {strides = array<i32>} : memref<16x66xf32, #tpu.memory_space<vmem>>, vector<16x64xf32>,
    %cst = arith.constant 1.000000e+00 : f32
    %4 = vector.broadcast %cst : f32 to vector<16x1xf32>
    %c0_7 = arith.constant 0 : index
    %c64 = arith.constant 64 : index
    %5 = vector.load %arg4[%c0_7, %c64] : memref<16x66xf32, #tpu.memory_space<vmem>>, vector<16x1xf32>
    tpu.vector_store %arg4[%c0_7, %c64], %4 {strides = array<i32>} : memref<16x66xf32, #tpu.memory_space<vmem>>, vector<16x1xf32>,
    %6 = arith.mulf %0, %0 : vector<16x64xf32>
    %cst_8 = arith.constant dense<0.000000e+00> : vector<16xf32>
    %7 = vector.multi_reduction <add>, %6, %cst_8 [1] : vector<16x64xf32> to vector<16xf32>
    %8 = vector.shape_cast %7 : vector<16xf32> to vector<16x1xf32>
    %c0_9 = arith.constant 0 : index
    %c65 = arith.constant 65 : index
    %9 = vector.load %arg4[%c0_9, %c65] : memref<16x66xf32, #tpu.memory_space<vmem>>, vector<16x1xf32>
    tpu.vector_store %arg4[%c0_9, %c65], %8 {strides = array<i32>} : memref<16x66xf32, #tpu.memory_space<vmem>>, vector<16x1xf32>,
    %cst_10 = arith.constant -2.000000e+00 : f32
    %10 = vector.broadcast %cst_10 : f32 to vector<20x64xf32>
    %11 = arith.mulf %10, %2 : vector<20x64xf32>
    %c0_11 = arith.constant 0 : index
    %c0_12 = arith.constant 0 : index
    %12 = vector.load %arg5[%c0_11, %c0_12] : memref<20x66xf32, #tpu.memory_space<vmem>>, vector<20x64xf32>
    tpu.vector_store %arg5[%c0_11, %c0_12], %11 {strides = array<i32>} : memref<20x66xf32, #tpu.memory_space<vmem>>, vector<20x64xf32>,
    %13 = arith.mulf %2, %2 : vector<20x64xf32>
    %cst_13 = arith.constant dense<0.000000e+00> : vector<20xf32>
    %14 = vector.multi_reduction <add>, %13, %cst_13 [1] : vector<20x64xf32> to vector<20xf32>
    %15 = vector.shape_cast %14 : vector<20xf32> to vector<20x1xf32>
    %c0_14 = arith.constant 0 : index
    %c64_15 = arith.constant 64 : index
    %16 = vector.load %arg5[%c0_14, %c64_15] : memref<20x66xf32, #tpu.memory_space<vmem>>, vector<20x1xf32>
    tpu.vector_store %arg5[%c0_14, %c64_15], %15 {strides = array<i32>} : memref<20x66xf32, #tpu.memory_space<vmem>>, vector<20x1xf32>,
    %cst_16 = arith.constant 1.000000e+00 : f32
    %17 = vector.broadcast %cst_16 : f32 to vector<20x1xf32>
    %c0_17 = arith.constant 0 : index
    %c65_18 = arith.constant 65 : index
    %18 = vector.load %arg5[%c0_17, %c65_18] : memref<20x66xf32, #tpu.memory_space<vmem>>, vector<20x1xf32>
    tpu.vector_store %arg5[%c0_17, %c65_18], %17 {strides = array<i32>} : memref<20x66xf32, #tpu.memory_space<vmem>>, vector<20x1xf32>,
    %c0_19 = arith.constant 0 : index
    %c0_20 = arith.constant 0 : index
    %19 = vector.load %arg4[%c0_19, %c0_20] : memref<16x66xf32, #tpu.memory_space<vmem>>, vector<16x66xf32>
    %c0_21 = arith.constant 0 : index
    %c0_22 = arith.constant 0 : index
    %20 = vector.load %arg5[%c0_21, %c0_22] : memref<20x66xf32, #tpu.memory_space<vmem>>, vector<20x66xf32>
    %cst_23 = arith.constant dense<0.000000e+00> : vector<16x20xf32>
    %21 = tpu.matmul %19, %20, %cst_23 {dimension_numbers = #tpu.dot_dimension_numbers<[1], [1], [0], [0], [0, 0, 1, 0], [], []>} : vector<16x66xf32>, vector<20x66xf32>, vector<16x20xf32> -> vector<16x20xf32>
    %cst_24 = arith.constant 0.000000e+00 : f32
    %22 = vector.broadcast %cst_24 : f32 to vector<16x20xf32>
    %23 = arith.maximumf %21, %22 : vector<16x20xf32>
    %24 = math.sqrt %23 : vector<16x20xf32>
    %25 = tpu.iota {dimensions = array<i32: 1>} : vector<16x20xi32>
    %26 = vector.broadcast %1 : vector<16x1xi32> to vector<16x20xi32>
    %27 = arith.cmpi eq, %26, %25 : vector<16x20xi32>
    %28 = arith.extui %27 : vector<16x20xi1> to vector<16x20xi32>
    %29 = arith.sitofp %28 : vector<16x20xi32> to vector<16x20xf32>
    %30 = arith.mulf %24, %29 : vector<16x20xf32>
    %cst_25 = arith.constant 9.99999996E-13 : f32
    %cst_26 = arith.constant 9.99999995E+11 : f32
    %31 = vector.broadcast %cst_25 : f32 to vector<16x20xf32>
    %32 = arith.maximumf %31, %30 : vector<16x20xf32>
    %33 = vector.broadcast %cst_26 : f32 to vector<16x20xf32>
    %34 = arith.minimumf %33, %32 : vector<16x20xf32>
    %35 = vector.shape_cast %34 : vector<16x20xf32> to vector<1x16x20xf32>
    %cst_27 = arith.constant dense<0.000000e+00> : vector<1xf32>
    %36 = vector.multi_reduction <add>, %35, %cst_27 [1, 2] : vector<1x16x20xf32> to vector<1xf32>
    %37 = vector.shape_cast %36 : vector<1xf32> to vector<1x1x1xf32>
    %38 = vector.extract %37[0, 0, 0] : f32 from vector<1x1x1xf32>
    %cst_28 = arith.constant 3.200000e+02 : f32
    %39 = arith.divf %38, %cst_28 : f32
    %c0_29 = arith.constant 0 : index
    %c0_30 = arith.constant 0 : index
    %40 = memref.load %arg3[%c0_29, %c0_30] : memref<1x1xf32, #tpu.memory_space<smem>>
    memref.store %39, %arg3[%c0_29, %c0_30] : memref<1x1xf32, #tpu.memory_space<smem>>
    return
  }
}

</mosaic_0001>

<llo_original>
// kernel: tpu_custom_call.1
$region0: #{tpu_custom_call.1}
  #allocation0 [shape = 'u32[]', space=smem, size = 0x4, offset = 0x4, fixed_abs, tag = 'smem constant byte address 0x4 - core index']
  #allocation1 [shape = 'u32[144,128]{1,0:T(1,128)}', space=vmem, size = 0x12000, scoped, tag = 'internal scratch']
  #allocation2 [shape = 'f32[16,66]{1,0:T(8,128)}', space=vmem, size = 0x2000, scoped, tag = 'scratch operand']
  #allocation3 [shape = 'f32[20,66]{1,0:T(8,128)}', space=vmem, size = 0x3000, scoped, tag = 'scratch operand']
  %s0 = inlined_call_operand.vmem [shape: f32[16,64], index: 0, kind: input, shape index: {}]
  %s1 = inlined_call_operand.vmem [shape: s32[16,1], index: 1, kind: input, shape index: {}]
  %s2 = inlined_call_operand.hbm [shape: f32[20,64], index: 2, kind: input, shape index: {}]
  %s3 = inlined_call_operand.hbm [shape: f32[1,1], index: 3, kind: output, shape index: {}]
  %s4 = sld [smem:[#allocation0]]
  $region26: #{tpu_custom_call.1} parent=0
    _
  %s6 = ssub.s32 1, %s4
  %s7 = scalar_select 0, %s6, %s4
  $region1: #{tpu_custom_call.1} parent=0
    #allocation4 [shape = 'u8[12288]{0}', space=vmem, size = 0x3000, scoped, tag = 'input window, operand 2, single buffered']
    #allocation5 [shape = 's32[1]{0}', space=sflag, size = 0x4, scoped, tag = 'scoped memory for tpu_custom_call.1']
    #allocation6 [shape = 's32[1]{0}', space=sflag, size = 0x4, scoped, tag = 'scoped memory for tpu_custom_call.1']
    #allocation7 [shape = 'u8[512]{0}', space=smem, size = 0x200, scoped, tag = 'output window, operand 0, single buffered']
    %8 = vsyncpa [#allocation5], 0
    %9 = vsyncpa [#allocation6], 0
    // Predicated region
    $region2: #{tpu_custom_call.1} parent=1 // pred_check
      _
    $region3: #{tpu_custom_call.1} parent=1 // pred_check_branch
      %11 = sbr.rel (0) target = $region5
    $region4: #{tpu_custom_call.1} parent=1 // pred_region
      _
    $region5: #{tpu_custom_call.1} parent=1 // pred_fallthru
      _
    // Predicated region
    $region6: #{tpu_custom_call.1} parent=1 // pred_check
      _
    $region7: #{tpu_custom_call.1} parent=1 // pred_check_branch
      %13 = sbr.rel (0) target = $region9
    $region8: #{tpu_custom_call.1} parent=1 // pred_region
      _
    $region9: #{tpu_custom_call.1} parent=1 // pred_fallthru
      _
    // Predicated region
    $region10: #{tpu_custom_call.1} parent=1 // pred_check
      _
    $region11: #{tpu_custom_call.1} parent=1 // pred_check_branch
      %15 = sbr.rel (0) target = $region13
    $region12: #{tpu_custom_call.1} parent=1 // pred_region
      %s17 = ssub.s32 384, 384
      %18 = vsyncadd [#allocation5], %s17
      %s19 = sshll.u32 [#allocation4], 4
      %s20 = int_to_ptr.vmem [resolvable:$true] %s19
      %25 = dma.hbm_to_vmem [thread:$0]  %s2, 384, %s20, [#allocation5], 128, 128, 8
    $region13: #{tpu_custom_call.1} parent=1 // pred_fallthru
      _
    // Predicated region
    $region14: #{tpu_custom_call.1} parent=1 // pred_check
      _
    $region15: #{tpu_custom_call.1} parent=1 // pred_check_branch
      %27 = sbr.rel (0) target = $region17
    $region16: #{tpu_custom_call.1} parent=1 // pred_region
      %28 = dma.done [#allocation5], 384
    $region17: #{tpu_custom_call.1} parent=1 // pred_fallthru
      _
    %v29 = vld [vmem:[%s0] sm:$0xff]
    %v30 = vld [vmem:[%s0 + $0x8] sm:$0xff]
    %v31 = vld [vmem:[%s1] sm:$0xff]
    %v32 = vld [vmem:[%s1 + $0x8] sm:$0xff]
    %v33 = vld [vmem:[#allocation4] sm:$0xff]
    %v34 = vld [vmem:[#allocation4 + $0x8] sm:$0xff]
    %v35 = vld [vmem:[#allocation4 + $0x10] sm:$0xf]
    %vm36 = vcmask 523264
    %37 = vst.msk [vmem:[#allocation2] sm:$0xff] %vm36, %v29
    %38 = vst.msk [vmem:[#allocation2 + $0x8] sm:$0xff] %vm36, %v30
    %vm39 = vcmask 531968
    %40 = vst.msk [vmem:[#allocation2] sm:$0xff] %vm39, 1.0
    %41 = vst.msk [vmem:[#allocation2 + $0x8] sm:$0xff] %vm39, 1.0
    %v42 = vmul.f32 %v29, %v29
    %v43 = vmul.f32 %v30, %v30
    %v44 = vsel %vm36, %v42, 0.0
    %45 = vadd.xlane.f32.xlu0 %v44
    %v46 = vpop.xlane.xlu0 %45
    %v47 = vsel %vm36, %v43, 0.0
    %48 = vadd.xlane.f32.xlu0 %v47
    %v49 = vpop.xlane.xlu0 %48
    %vm50 = vcmask 540168
    %51 = vst.msk [vmem:[#allocation2] sm:$0xff] %vm50, %v46
    %52 = vst.msk [vmem:[#allocation2 + $0x8] sm:$0xff] %vm50, %v49
    %v53 = vmul.f32 %v33, -2.0
    %v54 = vmul.f32 %v34, -2.0
    %v55 = vmul.f32 %v35, -2.0
    %56 = vst.msk [vmem:[#allocation3] sm:$0xff] %vm36, %v53
    %57 = vst.msk [vmem:[#allocation3 + $0x8] sm:$0xff] %vm36, %v54
    %vm58 = vcmask 519168
    %59 = vst.msk [vmem:[#allocation3 + $0x10] sm:$0xf] %vm58, %v55
    %v60 = vmul.f32 %v33, %v33
    %v61 = vmul.f32 %v34, %v34
    %v62 = vmul.f32 %v35, %v35
    %v63 = vsel %vm36, %v60, 0.0
    %64 = vadd.xlane.f32.xlu0 %v63
    %v65 = vpop.xlane.xlu0 %64
    %v66 = vsel %vm36, %v61, 0.0
    %67 = vadd.xlane.f32.xlu0 %v66
    %v68 = vpop.xlane.xlu0 %67
    %v69 = vsel %vm58, %v62, 0.0
    %70 = vadd.xlane.f32.xlu0 %v69
    %v71 = vpop.xlane.xlu0 %70
    %72 = vst.msk [vmem:[#allocation3] sm:$0xff] %vm39, %v65
    %73 = vst.msk [vmem:[#allocation3 + $0x8] sm:$0xff] %vm39, %v68
    %vm74 = vcmask 527872
    %75 = vst.msk [vmem:[#allocation3 + $0x10] sm:$0xf] %vm74, %v71
    %76 = vst.msk [vmem:[#allocation3] sm:$0xff] %vm50, 1.0
    %77 = vst.msk [vmem:[#allocation3 + $0x8] sm:$0xff] %vm50, 1.0
    %vm78 = vcmask 536072
    %79 = vst.msk [vmem:[#allocation3 + $0x10] sm:$0xf] %vm78, 1.0
    %v80 = vld [vmem:[#allocation2] sm:$0xff]
    %v81 = vld [vmem:[#allocation2 + $0x8] sm:$0xff]
    %v82 = vld [vmem:[#allocation3] sm:$0xff]
    %v83 = vld [vmem:[#allocation3 + $0x8] sm:$0xff]
    %v84 = vld [vmem:[#allocation3 + $0x10] sm:$0xf]
    %vm85 = vcmask 539648
    %v87 = vsel %vm85, %v80, 0
    %v90 = vsel %vm85, %v81, 0
    %v93 = vsel %vm85, %v82, 0
    %v96 = vsel %vm85, %v83, 0
    %v99 = vsel %vm85, %v84, 0
    %101 = vmatprep.subr.mxu0 0.0
    %102 = vmatpush1.xpose.msra.mxu0 0.0
    %103 = vmatprep.subr.mxu0 0.0
    %104 = vmatpush1.xpose.msra.mxu0 0.0
    %105 = vmatprep.subr.mxu0 0.0
    %106 = vmatpush1.xpose.msra.mxu0 0.0
    %107 = vmatprep.subr.mxu0 0.0
    %108 = vmatpush1.xpose.msra.mxu0 0.0
    %109 = vmatprep.subr.mxu0 0.0
    %110 = vmatpush1.xpose.msra.mxu0 0.0
    %111 = vmatprep.subr.mxu0 0.0
    %112 = vmatpush1.xpose.msra.mxu0 0.0
    %113 = vmatprep.subr.mxu0 0.0
    %114 = vmatpush1.xpose.msra.mxu0 0.0
    %115 = vmatprep.subr.mxu0 0.0
    %116 = vmatpush1.xpose.msra.mxu0 0.0
    %117 = vmatprep.subr.mxu0 0.0
    %118 = vmatpush1.xpose.msra.mxu0 0.0
    %119 = vmatprep.subr.mxu0 0.0
    %120 = vmatpush1.xpose.msra.mxu0 0.0
    %121 = vmatprep.subr.mxu0 0.0
    %122 = vmatpush1.xpose.msra.mxu0 0.0
    %123 = vmatprep.subr.mxu0 0.0
    %124 = vmatpush1.xpose.msra.mxu0 0.0
    %125 = vmatprep.subr.mxu0 0.0
    %126 = vmatpush1.xpose.msra.mxu0 0.0
    %127 = vmatprep.subr.mxu0 0.0
    %128 = vmatpush1.xpose.msra.mxu0 %v99
    %129 = vmatprep.subr.mxu0 0.0
    %130 = vmatpush1.xpose.msra.mxu0 %v96
    %131 = vmatprep.subr.mxu0 0.0
    %132 = vmatpush1.xpose.msra.mxu0 %v93
    %133 = vmatprep.subr.mxu0 0.0
    %134 = vmatpush2.xpose.msra.mxu0 0.0
    %135 = vmatprep.subr.mxu0 0.0
    %136 = vmatpush2.xpose.msra.mxu0 0.0
    %137 = vmatprep.subr.mxu0 0.0
    %138 = vmatpush2.xpose.msra.mxu0 0.0
    %139 = vmatprep.subr.mxu0 0.0
    %140 = vmatpush2.xpose.msra.mxu0 0.0
    %141 = vmatprep.subr.mxu0 0.0
    %142 = vmatpush2.xpose.msra.mxu0 0.0
    %143 = vmatprep.subr.mxu0 0.0
    %144 = vmatpush2.xpose.msra.mxu0 0.0
    %145 = vmatprep.subr.mxu0 0.0
    %146 = vmatpush2.xpose.msra.mxu0 0.0
    %147 = vmatprep.subr.mxu0 0.0
    %148 = vmatpush2.xpose.msra.mxu0 0.0
    %149 = vmatprep.subr.mxu0 0.0
    %150 = vmatpush2.xpose.msra.mxu0 0.0
    %151 = vmatprep.subr.mxu0 0.0
    %152 = vmatpush2.xpose.msra.mxu0 0.0
    %153 = vmatprep.subr.mxu0 0.0
    %154 = vmatpush2.xpose.msra.mxu0 0.0
    %155 = vmatprep.subr.mxu0 0.0
    %156 = vmatpush2.xpose.msra.mxu0 0.0
    %157 = vmatprep.subr.mxu0 0.0
    %158 = vmatpush2.xpose.msra.mxu0 0.0
    %159 = vmatprep.subr.mxu0 0.0
    %160 = vmatpush2.xpose.msra.mxu0 0.0
    %161 = vmatprep.subr.mxu0 0.0
    %162 = vmatpush2.xpose.msra.mxu0 0.0
    %163 = vmatprep.subr.mxu0 0.0
    %164 = vmatpush2.xpose.msra.mxu0 0.0
    %165 = vmatprep.mubr.f32.mxu0 0.0
    %166 = vmatmul.mubr.f32.gmra.mxu0 %v87
    %v167 = vpop.f32.mrf.mxu0
    %v168 = vadd.f32 0.0, %v167
    %v169 = vpop.f32.mrf.mxu0
    %170 = vmatprep.mubr.f32.mxu0 0.0
    %171 = vmatmul.mubr.f32.gmra.mxu0 %v90
    %v172 = vpop.f32.mrf.mxu0
    %v173 = vadd.f32 0.0, %v172
    %v174 = vpop.f32.mrf.mxu0
    %175 = vdwg.mxu0
    %v176 = vmax.f32 %v168, 0.0
    %v177 = vmax.f32 %v173, 0.0
    %v178 = vrsqrt.pop %v176
    %v179 = vmul.f32 %v176, %v178
    %vm180 = vcmp.eq.f32.partialorder %v176, inf
    %v181 = vsel %vm180, %v176, %v179
    %vm182 = vcmp.eq.f32.partialorder %v176, 0.0
    %v183 = vand.u32 %v176, 2147483648
    %v184 = vsel %vm182, %v183, %v181
    %v185 = vrsqrt.pop %v177
    %v186 = vmul.f32 %v177, %v185
    %vm187 = vcmp.eq.f32.partialorder %v177, inf
    %v188 = vsel %vm187, %v177, %v186
    %vm189 = vcmp.eq.f32.partialorder %v177, 0.0
    %v190 = vand.u32 %v177, 2147483648
    %v191 = vsel %vm189, %v190, %v188
    %v192 = vlaneseq
    %v193 = vand.u32 %v192, 127
    %194 = vset.pattern.permute.xlu0 0
    %195 = vperm.xlu0 %194, %v31
    %v196 = vpop.permute.xlu0 %195
    %197 = vset.pattern.permute.xlu0 0
    %198 = vperm.xlu0 %197, %v32
    %v199 = vpop.permute.xlu0 %198
    %vm200 = vcmp.eq.s32.totalorder %v196, %v193
    %vm201 = vcmp.eq.s32.totalorder %v199, %v193
    %v202 = vsel %vm200, 1, 0
    %v203 = vsel %vm201, 1, 0
    %v204 = vcvt.s32.f32 %v202
    %v205 = vcvt.s32.f32 %v203
    %v206 = vmul.f32 %v184, %v204
    %v207 = vmul.f32 %v191, %v205
    %v208 = vmax.f32 %v206, 1e-12
    %v209 = vmax.f32 %v207, 1e-12
    %v210 = vmin.f32 %v208, 1e+12
    %v211 = vmin.f32 %v209, 1e+12
    %vm212 = vcmask 162816
    %v213 = vsel %vm212, %v210, 0.0
    %v214 = vsel %vm212, %v211, 0.0
    %v215 = vadd.f32 %v213, %v214
    %216 = vadd.xlane.f32.xlu0 %v215
    %v217 = vpop.xlane.xlu0 %216
    %v218 = vrot.slane %v217, 4
    %v219 = vadd.f32 %v217, %v218
    %v220 = vrot.slane %v219, 2
    %v221 = vadd.f32 %v219, %v220
    %v222 = vrot.slane %v221, 1
    %v223 = vadd.f32 %v221, %v222
    %s224 = vtos %v223
    %v225 = vrcp.pop 320.0
    %s226 = vtos %v225
    %s227 = smul.f32 %s224, %s226
    %s228 = scalar_lea.smem [#allocation7], 0
    %229 = sst [smem:[%s228]] %s227
    // Predicated region
    $region18: #{tpu_custom_call.1} parent=1 // pred_check
      _
    $region19: #{tpu_custom_call.1} parent=1 // pred_check_branch
      %231 = sbr.rel (0) target = $region21
    $region20: #{tpu_custom_call.1} parent=1 // pred_region
      %s233 = ssub.s32 16, 16
      %234 = vsyncadd [#allocation6], %s233
      %237 = dma.smem_to_hbm [#allocation7], 16, %s3, [#allocation6]
    $region21: #{tpu_custom_call.1} parent=1 // pred_fallthru
      _
    // Predicated region
    $region22: #{tpu_custom_call.1} parent=1 // pred_check
      _
    $region23: #{tpu_custom_call.1} parent=1 // pred_check_branch
      %239 = sbr.rel (0) target = $region25
    $region24: #{tpu_custom_call.1} parent=1 // pred_region
      %240 = dma.done [#allocation6], 16
    $region25: #{tpu_custom_call.1} parent=1 // pred_fallthru
      _
    %241 = sfence
    %242 = vsyncpa [#allocation5], 1
    %243 = vsyncpa [#allocation6], 1

</llo_original>
